<compile_context>
chip_gen: v6e
topology: v6e:2x2x1
jax: 0.10.0
libtpu: 0.0.40
codegen_flags: <defaults>
</compile_context>

<pallas_src>
import functools

import jax
import jax.numpy as jnp
from jax.experimental import pallas as pl
from jax.experimental.pallas import tpu as pltpu

LANE = 128
SUBLANE = 8


def _round_up(v, m):
    return (v + m - 1) // m * m


def _mlp_kernel(x_ref, w1_ref, b1_ref, w2_ref, b2_ref, o_ref):
    # Hidden layer: x @ W1 on the MXU, f32 accumulation.
    x = x_ref[...]
    h = jnp.dot(x.astype(w1_ref.dtype), w1_ref[...],
                preferred_element_type=jnp.float32)
    # Bias + ReLU epilogue in f32 (v5e VPU has no bf16 datapath).
    h = jnp.maximum(h + b1_ref[...], 0.0)            # b1 is (1, hid_p) -> broadcast
    # Output layer: h @ W2, f32 accumulation.
    y = jnp.dot(h.astype(w2_ref.dtype), w2_ref[...],
                preferred_element_type=jnp.float32)
    o_ref[...] = (y + b2_ref[...]).astype(o_ref.dtype)


def _footprint_bytes(bb, in_f, hid_p, out_f, wbytes):
    x_bytes = 2 * bb * in_f * 4                    # double-buffered x tiles (f32)
    o_bytes = 2 * bb * out_f * 4                   # double-buffered out tiles (f32)
    w_bytes = (in_f * hid_p + hid_p * out_f) * wbytes + (hid_p + out_f) * 4
    h_bytes = bb * hid_p * 4                       # f32 hidden activations
    if wbytes < 4:                                 # low-precision copies for the MXU
        h_bytes += bb * hid_p * wbytes + bb * in_f * wbytes
    return x_bytes + o_bytes + w_bytes + h_bytes


def _is_dual_tensorcore():
    """Best-effort check for a dual-TensorCore chip (v7x)."""
    try:
        kind = jax.devices()[0].device_kind.lower()
    except Exception:
        return False
    return "v7" in kind


def _vmem_capacity_bytes():
    try:
        return int(pltpu.get_tpu_info().vmem_capacity_bytes)
    except Exception:
        return 64 * 1024 * 1024  # conservative (v7x per-TensorCore)


@functools.partial(jax.jit, static_argnames=("block_b", "use_bf16"))
def mlp_forward(x, w1, b1, w2, b2, *, block_b=2048, use_bf16=False):
    """Pallas MLP forward.

    x:  [B, in]       (float32)
    w1: [in, hidden]  b1: [1, hidden]
    w2: [hidden, out] b2: [1, out]
    returns [B, out]  (float32)
    """
    B, in_f = x.shape
    hidden = w1.shape[1]
    out_f = w2.shape[1]

    # Hidden dim padded to a full lane width (weights are tiny + VMEM-resident;
    # padded columns/rows are zeros, contributing exactly 0 to real outputs).
    hid_p = _round_up(hidden, LANE)

    w_dtype = jnp.bfloat16 if use_bf16 else jnp.float32
    wbytes = 2 if use_bf16 else 4

    # --- choose the batch tile (multiple of 8; never bigger than needed) ---
    bb = min(block_b, _round_up(B, SUBLANE))
    bb = max(SUBLANE, (bb // SUBLANE) * SUBLANE)

    # Safety valve: keep the working set well inside scoped VMEM on all gens.
    vmem_cap = _vmem_capacity_bytes()
    budget = min(vmem_cap // 4, 16 * 1024 * 1024)
    while bb > SUBLANE and _footprint_bytes(bb, in_f, hid_p, out_f, wbytes) > budget:
        bb = max(SUBLANE, (bb // 2) // SUBLANE * SUBLANE)

    # Only split into >=2 grid steps on dual-TensorCore chips (v7x); on
    # v5e/v6e it would just shrink the tile for nothing.
    if _is_dual_tensorcore() and B >= 2 * SUBLANE and pl.cdiv(B, bb) < 2:
        bb = max(SUBLANE, _round_up(pl.cdiv(B, 2), SUBLANE))

    grid = (pl.cdiv(B, bb),)   # ragged last block handled by Pallas (no x pad)

    # --- pad params only (tiny, VMEM-resident once) ---
    w1_p = jnp.pad(w1, ((0, 0), (0, hid_p - hidden))).astype(w_dtype)
    b1_p = jnp.pad(b1, ((0, 0), (0, hid_p - hidden))).astype(jnp.float32)
    w2_p = jnp.pad(w2, ((0, hid_p - hidden), (0, 0))).astype(w_dtype)
    b2_p = b2.astype(jnp.float32)

    footprint = _footprint_bytes(bb, in_f, hid_p, out_f, wbytes)
    # Tight request derived from the actual footprint (no 32-60 MiB reservation).
    vmem_limit = int(min(2 * footprint + 4 * 1024 * 1024, 48 * 1024 * 1024))

    flops = 2 * B * (in_f * hid_p + hid_p * out_f)
    bytes_accessed = (B * in_f * 4 + B * out_f * 4
                      + (in_f * hid_p + hid_p * out_f) * wbytes
                      + (hid_p + out_f) * 4)

    out = pl.pallas_call(
        _mlp_kernel,
        out_shape=jax.ShapeDtypeStruct((B, out_f), x.dtype),
        grid_spec=pltpu.PrefetchScalarGridSpec(
            num_scalar_prefetch=0,
            grid=grid,
            in_specs=[
                # x: tiled over the batch axis, auto-pipelined. Last dim equals
                # the full array dim, so no feature padding is required.
                pl.BlockSpec((bb, in_f), lambda i: (i, 0)),
                # Weights / biases: resident in VMEM for the whole kernel
                # (no per-step double-buffering / DMA descriptors).
                pl.BlockSpec(memory_space=pltpu.MemorySpace.VMEM),
                pl.BlockSpec(memory_space=pltpu.MemorySpace.VMEM),
                pl.BlockSpec(memory_space=pltpu.MemorySpace.VMEM),
                pl.BlockSpec(memory_space=pltpu.MemorySpace.VMEM),
            ],
            # Output last dim equals the full array dim (legal); the masked
            # stores are hidden under the HBM bottleneck and writeback is 8x
            # smaller than with 128-lane padding.
            out_specs=pl.BlockSpec((bb, out_f), lambda i: (i, 0)),
        ),
        compiler_params=pltpu.CompilerParams(
            dimension_semantics=("parallel",),
            vmem_limit_bytes=vmem_limit,
        ),
        cost_estimate=pl.CostEstimate(
            flops=flops, transcendentals=0, bytes_accessed=bytes_accessed),
    )(x, w1_p, b1_p, w2_p, b2_p)

    return out

    # TODO(synk): for transformer-FFN-scale in/hidden where the weights no
    # longer fit VMEM, add a K-reduction grid axis with an f32 VMEM accumulator
    # (pl.when init/finalize, axis marked "arbitrary" and last in the grid) and
    # switch weights/activations to bf16 through HBM.


def init_mlp_params(key, input_size, output_size, hidden_size=112,
                    dtype=jnp.float32):
    """Deterministic init mirroring torch.nn.Linear defaults:
    U(-1/sqrt(fan_in), 1/sqrt(fan_in)) for both weight and bias."""
    k1, k2, k3, k4 = jax.random.split(key, 4)
    bound1 = 1.0 / jnp.sqrt(jnp.array(input_size, dtype))
    bound2 = 1.0 / jnp.sqrt(jnp.array(hidden_size, dtype))
    # Stored already transposed: [in, hidden], [hidden, out]
    w1 = jax.random.uniform(k1, (input_size, hidden_size), dtype,
                            minval=-bound1, maxval=bound1)
    b1 = jax.random.uniform(k2, (1, hidden_size), dtype,
                            minval=-bound1, maxval=bound1)
    w2 = jax.random.uniform(k3, (hidden_size, output_size), dtype,
                            minval=-bound2, maxval=bound2)
    b2 = jax.random.uniform(k4, (1, output_size), dtype,
                            minval=-bound2, maxval=bound2)
    return w1, b1, w2, b2


if __name__ == "__main__":
    key = jax.random.PRNGKey(0)
    kx, kp = jax.random.split(key)

    batch = 8
    input_size = 32
    hidden_size = 112
    output_size = 16

    x = jax.random.normal(kx, (batch, input_size), jnp.float32)
    w1, b1, w2, b2 = init_mlp_params(kp, input_size, output_size, hidden_size)

    y = mlp_forward(x, w1, b1, w2, b2)
    y = jax.block_until_ready(y)
    assert y.shape == (batch, output_size)

    # Pure f32 reference (same semantics as the nn.Sequential forward). Loose
    # tolerance covers default-precision MXU accumulation differences.
    y_ref = jnp.maximum(x @ w1 + b1, 0.0) @ w2 + b2
    assert jnp.allclose(y, y_ref, atol=5e-2, rtol=5e-2), "f32-ref mismatch"

    # Ragged batch tail (B not a multiple of the tile) exercises the
    # no-wrapper-pad path: OOB rows are computed but never stored.
    x2 = jax.random.normal(kx, (13, input_size), jnp.float32)
    y2 = jax.block_until_ready(mlp_forward(x2, w1, b1, w2, b2))
    y2_ref = jnp.maximum(x2 @ w1 + b1, 0.0) @ w2 + b2
    assert y2.shape == (13, output_size)
    assert jnp.allclose(y2, y2_ref, atol=5e-2, rtol=5e-2), "ragged-batch mismatch"

    print("KERNEL_OK")
</pallas_src>

<mosaic_0001>
module attributes {stable_mosaic.version = 11 : i64} {
  func.func @_mlp_kernel(%arg0: i32, %arg1: memref<8x32xf32, #tpu.memory_space<vmem>>, %arg2: memref<32x128xf32, #tpu.memory_space<vmem>>, %arg3: memref<1x128xf32, #tpu.memory_space<vmem>>, %arg4: memref<128x16xf32, #tpu.memory_space<vmem>>, %arg5: memref<1x16xf32, #tpu.memory_space<vmem>>, %arg6: memref<8x16xf32, #tpu.memory_space<vmem>>) attributes {dimension_semantics = [#tpu.dimension_semantics<parallel>], iteration_bounds = array<i64: 1>, scalar_prefetch = 0 : i64, scratch_operands = 0 : i64, tpu.core_type = #tpu.core_type<tc>, window_params = [{transform_indices = @transform_0, window_bounds = array<i64: 8, 32>}, {pipeline_mode = #tpu.pipeline_mode<synchronous>, transform_indices = @transform_1, window_bounds = array<i64: 32, 128>}, {pipeline_mode = #tpu.pipeline_mode<synchronous>, transform_indices = @transform_2, window_bounds = array<i64: 1, 128>}, {pipeline_mode = #tpu.pipeline_mode<synchronous>, transform_indices = @transform_3, window_bounds = array<i64: 128, 16>}, {pipeline_mode = #tpu.pipeline_mode<synchronous>, transform_indices = @transform_4, window_bounds = array<i64: 1, 16>}, {transform_indices = @transform_5, window_bounds = array<i64: 8, 16>}]} {
    %c0 = arith.constant 0 : index
    %c0_0 = arith.constant 0 : index
    %0 = vector.load %arg1[%c0, %c0_0] : memref<8x32xf32, #tpu.memory_space<vmem>>, vector<8x32xf32>
    %c0_1 = arith.constant 0 : index
    %c0_2 = arith.constant 0 : index
    %1 = vector.load %arg2[%c0_1, %c0_2] : memref<32x128xf32, #tpu.memory_space<vmem>>, vector<32x128xf32>
    %cst = arith.constant dense<0.000000e+00> : vector<8x128xf32>
    %2 = tpu.matmul %0, %1, %cst {dimension_numbers = #tpu.dot_dimension_numbers<[1], [0], [0], [1], [0, 0, 1, 1], [], []>} : vector<8x32xf32>, vector<32x128xf32>, vector<8x128xf32> -> vector<8x128xf32>
    %c0_3 = arith.constant 0 : index
    %c0_4 = arith.constant 0 : index
    %3 = vector.load %arg3[%c0_3, %c0_4] : memref<1x128xf32, #tpu.memory_space<vmem>>, vector<1x128xf32>
    %4 = vector.broadcast %3 : vector<1x128xf32> to vector<8x128xf32>
    %5 = arith.addf %2, %4 : vector<8x128xf32>
    %cst_5 = arith.constant 0.000000e+00 : f32
    %6 = vector.broadcast %cst_5 : f32 to vector<8x128xf32>
    %7 = arith.maximumf %5, %6 : vector<8x128xf32>
    %c0_6 = arith.constant 0 : index
    %c0_7 = arith.constant 0 : index
    %8 = vector.load %arg4[%c0_6, %c0_7] : memref<128x16xf32, #tpu.memory_space<vmem>>, vector<128x16xf32>
    %cst_8 = arith.constant dense<0.000000e+00> : vector<8x16xf32>
    %9 = tpu.matmul %7, %8, %cst_8 {dimension_numbers = #tpu.dot_dimension_numbers<[1], [0], [0], [1], [0, 0, 1, 1], [], []>} : vector<8x128xf32>, vector<128x16xf32>, vector<8x16xf32> -> vector<8x16xf32>
    %c0_9 = arith.constant 0 : index
    %c0_10 = arith.constant 0 : index
    %10 = vector.load %arg5[%c0_9, %c0_10] : memref<1x16xf32, #tpu.memory_space<vmem>>, vector<1x16xf32>
    %11 = vector.broadcast %10 : vector<1x16xf32> to vector<8x16xf32>
    %12 = arith.addf %9, %11 : vector<8x16xf32>
    %c0_11 = arith.constant 0 : index
    %c0_12 = arith.constant 0 : index
    %13 = vector.load %arg6[%c0_11, %c0_12] : memref<8x16xf32, #tpu.memory_space<vmem>>, vector<8x16xf32>
    tpu.vector_store %arg6[%c0_11, %c0_12], %12 {strides = array<i32>} : memref<8x16xf32, #tpu.memory_space<vmem>>, vector<8x16xf32>,
    return
  }
  func.func @transform_0(%arg0: i32) -> (i32, i32) {
    %c0_i32 = arith.constant 0 : i32
    %c0_i32_0 = arith.constant 0 : i32
    return %arg0, %c0_i32 : i32, i32
  }
  func.func @transform_1(%arg0: i32) -> (i32, i32) {
    %c0_i32 = arith.constant 0 : i32
    %c0_i32_0 = arith.constant 0 : i32
    %c0_i32_1 = arith.constant 0 : i32
    return %c0_i32, %c0_i32_0 : i32, i32
  }
  func.func @transform_2(%arg0: i32) -> (i32, i32) {
    %c0_i32 = arith.constant 0 : i32
    %c0_i32_0 = arith.constant 0 : i32
    %c0_i32_1 = arith.constant 0 : i32
    return %c0_i32, %c0_i32_0 : i32, i32
  }
  func.func @transform_3(%arg0: i32) -> (i32, i32) {
    %c0_i32 = arith.constant 0 : i32
    %c0_i32_0 = arith.constant 0 : i32
    %c0_i32_1 = arith.constant 0 : i32
    return %c0_i32, %c0_i32_0 : i32, i32
  }
  func.func @transform_4(%arg0: i32) -> (i32, i32) {
    %c0_i32 = arith.constant 0 : i32
    %c0_i32_0 = arith.constant 0 : i32
    %c0_i32_1 = arith.constant 0 : i32
    return %c0_i32, %c0_i32_0 : i32, i32
  }
  func.func @transform_5(%arg0: i32) -> (i32, i32) {
    %c0_i32 = arith.constant 0 : i32
    %c0_i32_0 = arith.constant 0 : i32
    return %arg0, %c0_i32 : i32, i32
  }
}

</mosaic_0001>

<llo_original>
// kernel: mlp_forward.1
$region0: #{mlp_forward.1}
  #allocation0 [shape = 'u32[]', space=smem, size = 0x4, offset = 0x4, fixed_abs, tag = 'smem constant byte address 0x4 - core index']
  #allocation1 [shape = 'u32[144,128]{1,0:T(1,128)}', space=vmem, size = 0x12000, scoped, tag = 'internal scratch']
  %s0 = inlined_call_operand.vmem [shape: f32[8,32], index: 0, kind: input, shape index: {}]
  %s1 = inlined_call_operand.vmem [shape: f32[32,128], index: 1, kind: input, shape index: {}]
  %s2 = inlined_call_operand.vmem [shape: f32[1,128], index: 2, kind: input, shape index: {}]
  %s3 = inlined_call_operand.vmem [shape: f32[128,16], index: 3, kind: input, shape index: {}]
  %s4 = inlined_call_operand.vmem [shape: f32[1,16], index: 4, kind: input, shape index: {}]
  %s5 = inlined_call_operand.hbm [shape: f32[8,16], index: 5, kind: output, shape index: {}]
  %s6 = sld [smem:[#allocation0]]
  $region30: #{mlp_forward.1} parent=0
    _
  %s8 = ssub.s32 1, %s6
  %s9 = scalar_select 0, %s8, %s6
  $region1: #{mlp_forward.1} parent=0
    #allocation2 [shape = 'u8[4096]{0}', space=vmem, size = 0x1000, scoped, tag = 'output window, operand 0, single buffered']
    #allocation3 [shape = 's32[1]{0}', space=sflag, size = 0x4, scoped, tag = 'scoped memory for mlp_forward.1']
    %10 = vsyncpa [#allocation3], 0
    // Predicated region
    $region2: #{mlp_forward.1} parent=1 // pred_check
      _
    $region3: #{mlp_forward.1} parent=1 // pred_check_branch
      %12 = sbr.rel (0) target = $region5
    $region4: #{mlp_forward.1} parent=1 // pred_region
      _
    $region5: #{mlp_forward.1} parent=1 // pred_fallthru
      _
    // Predicated region
    $region6: #{mlp_forward.1} parent=1 // pred_check
      _
    $region7: #{mlp_forward.1} parent=1 // pred_check_branch
      %14 = sbr.rel (0) target = $region9
    $region8: #{mlp_forward.1} parent=1 // pred_region
      _
    $region9: #{mlp_forward.1} parent=1 // pred_fallthru
      _
    // Predicated region
    $region10: #{mlp_forward.1} parent=1 // pred_check
      _
    $region11: #{mlp_forward.1} parent=1 // pred_check_branch
      %16 = sbr.rel (0) target = $region13
    $region12: #{mlp_forward.1} parent=1 // pred_region
      _
    $region13: #{mlp_forward.1} parent=1 // pred_fallthru
      _
    // Predicated region
    $region14: #{mlp_forward.1} parent=1 // pred_check
      _
    $region15: #{mlp_forward.1} parent=1 // pred_check_branch
      %18 = sbr.rel (0) target = $region17
    $region16: #{mlp_forward.1} parent=1 // pred_region
      _
    $region17: #{mlp_forward.1} parent=1 // pred_fallthru
      _
    // Predicated region
    $region18: #{mlp_forward.1} parent=1 // pred_check
      _
    $region19: #{mlp_forward.1} parent=1 // pred_check_branch
      %20 = sbr.rel (0) target = $region21
    $region20: #{mlp_forward.1} parent=1 // pred_region
      _
    $region21: #{mlp_forward.1} parent=1 // pred_fallthru
      _
    %v21 = vld [vmem:[%s0] sm:$0xff]
    %v22 = vld [vmem:[%s1] sm:$0xff]
    %v23 = vld [vmem:[%s1 + $0x8] sm:$0xff]
    %v24 = vld [vmem:[%s1 + $0x10] sm:$0xff]
    %v25 = vld [vmem:[%s1 + $0x18] sm:$0xff]
    %v26 = vld [vmem:[%s2] sm:$0x1]
    %v28 = vlaneseq
    %v29 = vshrl.u32 %v28, 7
    %v30 = vsub.s32 0, %v29
    %v31 = vrot.slane %v26, %v30
    %vm33 = vcmask 261120
    %v35 = vsel %vm33, %v21, 0
    %37 = vmatprep.subr.mxu0 0.0
    %38 = vmatpush1.msra.mxu0 0.0
    %39 = vmatprep.subr.mxu0 0.0
    %40 = vmatpush1.msra.mxu0 0.0
    %41 = vmatprep.subr.mxu0 0.0
    %42 = vmatpush1.msra.mxu0 0.0
    %43 = vmatprep.subr.mxu0 0.0
    %44 = vmatpush1.msra.mxu0 0.0
    %45 = vmatprep.subr.mxu0 0.0
    %46 = vmatpush1.msra.mxu0 0.0
    %47 = vmatprep.subr.mxu0 0.0
    %48 = vmatpush1.msra.mxu0 0.0
    %49 = vmatprep.subr.mxu0 0.0
    %50 = vmatpush1.msra.mxu0 0.0
    %51 = vmatprep.subr.mxu0 0.0
    %52 = vmatpush1.msra.mxu0 0.0
    %53 = vmatprep.subr.mxu0 0.0
    %54 = vmatpush1.msra.mxu0 0.0
    %55 = vmatprep.subr.mxu0 0.0
    %56 = vmatpush1.msra.mxu0 0.0
    %57 = vmatprep.subr.mxu0 0.0
    %58 = vmatpush1.msra.mxu0 0.0
    %59 = vmatprep.subr.mxu0 0.0
    %60 = vmatpush1.msra.mxu0 0.0
    %61 = vmatprep.subr.mxu0 0.0
    %62 = vmatpush1.msra.mxu0 %v25
    %63 = vmatprep.subr.mxu0 0.0
    %64 = vmatpush1.msra.mxu0 %v24
    %65 = vmatprep.subr.mxu0 0.0
    %66 = vmatpush1.msra.mxu0 %v23
    %67 = vmatprep.subr.mxu0 0.0
    %68 = vmatpush1.msra.mxu0 %v22
    %69 = vmatprep.subr.mxu0 0.0
    %70 = vmatpush2.msra.mxu0 0.0
    %71 = vmatprep.subr.mxu0 0.0
    %72 = vmatpush2.msra.mxu0 0.0
    %73 = vmatprep.subr.mxu0 0.0
    %74 = vmatpush2.msra.mxu0 0.0
    %75 = vmatprep.subr.mxu0 0.0
    %76 = vmatpush2.msra.mxu0 0.0
    %77 = vmatprep.subr.mxu0 0.0
    %78 = vmatpush2.msra.mxu0 0.0
    %79 = vmatprep.subr.mxu0 0.0
    %80 = vmatpush2.msra.mxu0 0.0
    %81 = vmatprep.subr.mxu0 0.0
    %82 = vmatpush2.msra.mxu0 0.0
    %83 = vmatprep.subr.mxu0 0.0
    %84 = vmatpush2.msra.mxu0 0.0
    %85 = vmatprep.subr.mxu0 0.0
    %86 = vmatpush2.msra.mxu0 0.0
    %87 = vmatprep.subr.mxu0 0.0
    %88 = vmatpush2.msra.mxu0 0.0
    %89 = vmatprep.subr.mxu0 0.0
    %90 = vmatpush2.msra.mxu0 0.0
    %91 = vmatprep.subr.mxu0 0.0
    %92 = vmatpush2.msra.mxu0 0.0
    %93 = vmatprep.subr.mxu0 0.0
    %94 = vmatpush2.msra.mxu0 0.0
    %95 = vmatprep.subr.mxu0 0.0
    %96 = vmatpush2.msra.mxu0 0.0
    %97 = vmatprep.subr.mxu0 0.0
    %98 = vmatpush2.msra.mxu0 0.0
    %99 = vmatprep.subr.mxu0 0.0
    %100 = vmatpush2.msra.mxu0 0.0
    %101 = vmatprep.mubr.f32.mxu0 0.0
    %102 = vmatmul.mubr.f32.gmra.mxu0 %v35
    %v103 = vpop.f32.mrf.mxu0
    %v104 = vadd.f32 %v31, %v103
    %v105 = vpop.f32.mrf.mxu0
    %106 = vdwg.mxu0
    %v107 = vmax.f32 %v104, 0.0
    %v108 = vld [vmem:[%s3] sm:$0xff]
    %v109 = vld [vmem:[%s3 + $0x8] sm:$0xff]
    %v110 = vld [vmem:[%s3 + $0x10] sm:$0xff]
    %v111 = vld [vmem:[%s3 + $0x18] sm:$0xff]
    %v112 = vld [vmem:[%s3 + $0x20] sm:$0xff]
    %v113 = vld [vmem:[%s3 + $0x28] sm:$0xff]
    %v114 = vld [vmem:[%s3 + $0x30] sm:$0xff]
    %v115 = vld [vmem:[%s3 + $0x38] sm:$0xff]
    %v116 = vld [vmem:[%s3 + $0x40] sm:$0xff]
    %v117 = vld [vmem:[%s3 + $0x48] sm:$0xff]
    %v118 = vld [vmem:[%s3 + $0x50] sm:$0xff]
    %v119 = vld [vmem:[%s3 + $0x58] sm:$0xff]
    %v120 = vld [vmem:[%s3 + $0x60] sm:$0xff]
    %v121 = vld [vmem:[%s3 + $0x68] sm:$0xff]
    %v122 = vld [vmem:[%s3 + $0x70] sm:$0xff]
    %v123 = vld [vmem:[%s3 + $0x78] sm:$0xff]
    %v124 = vld [vmem:[%s4] sm:$0x1]
    %v126 = vlaneseq
    %v127 = vshrl.u32 %v126, 7
    %v128 = vsub.s32 0, %v127
    %v129 = vrot.slane %v124, %v128
    %131 = vmatprep.subr.mxu0 0.0
    %132 = vmatpush1.msra.mxu0 %v123
    %133 = vmatprep.subr.mxu0 0.0
    %134 = vmatpush1.msra.mxu0 %v122
    %135 = vmatprep.subr.mxu0 0.0
    %136 = vmatpush1.msra.mxu0 %v121
    %137 = vmatprep.subr.mxu0 0.0
    %138 = vmatpush1.msra.mxu0 %v120
    %139 = vmatprep.subr.mxu0 0.0
    %140 = vmatpush1.msra.mxu0 %v119
    %141 = vmatprep.subr.mxu0 0.0
    %142 = vmatpush1.msra.mxu0 %v118
    %143 = vmatprep.subr.mxu0 0.0
    %144 = vmatpush1.msra.mxu0 %v117
    %145 = vmatprep.subr.mxu0 0.0
    %146 = vmatpush1.msra.mxu0 %v116
    %147 = vmatprep.subr.mxu0 0.0
    %148 = vmatpush1.msra.mxu0 %v115
    %149 = vmatprep.subr.mxu0 0.0
    %150 = vmatpush1.msra.mxu0 %v114
    %151 = vmatprep.subr.mxu0 0.0
    %152 = vmatpush1.msra.mxu0 %v113
    %153 = vmatprep.subr.mxu0 0.0
    %154 = vmatpush1.msra.mxu0 %v112
    %155 = vmatprep.subr.mxu0 0.0
    %156 = vmatpush1.msra.mxu0 %v111
    %157 = vmatprep.subr.mxu0 0.0
    %158 = vmatpush1.msra.mxu0 %v110
    %159 = vmatprep.subr.mxu0 0.0
    %160 = vmatpush1.msra.mxu0 %v109
    %161 = vmatprep.subr.mxu0 0.0
    %162 = vmatpush1.msra.mxu0 %v108
    %163 = vmatprep.subr.mxu0 0.0
    %164 = vmatpush2.msra.mxu0 0.0
    %165 = vmatprep.subr.mxu0 0.0
    %166 = vmatpush2.msra.mxu0 0.0
    %167 = vmatprep.subr.mxu0 0.0
    %168 = vmatpush2.msra.mxu0 0.0
    %169 = vmatprep.subr.mxu0 0.0
    %170 = vmatpush2.msra.mxu0 0.0
    %171 = vmatprep.subr.mxu0 0.0
    %172 = vmatpush2.msra.mxu0 0.0
    %173 = vmatprep.subr.mxu0 0.0
    %174 = vmatpush2.msra.mxu0 0.0
    %175 = vmatprep.subr.mxu0 0.0
    %176 = vmatpush2.msra.mxu0 0.0
    %177 = vmatprep.subr.mxu0 0.0
    %178 = vmatpush2.msra.mxu0 0.0
    %179 = vmatprep.subr.mxu0 0.0
    %180 = vmatpush2.msra.mxu0 0.0
    %181 = vmatprep.subr.mxu0 0.0
    %182 = vmatpush2.msra.mxu0 0.0
    %183 = vmatprep.subr.mxu0 0.0
    %184 = vmatpush2.msra.mxu0 0.0
    %185 = vmatprep.subr.mxu0 0.0
    %186 = vmatpush2.msra.mxu0 0.0
    %187 = vmatprep.subr.mxu0 0.0
    %188 = vmatpush2.msra.mxu0 0.0
    %189 = vmatprep.subr.mxu0 0.0
    %190 = vmatpush2.msra.mxu0 0.0
    %191 = vmatprep.subr.mxu0 0.0
    %192 = vmatpush2.msra.mxu0 0.0
    %193 = vmatprep.subr.mxu0 0.0
    %194 = vmatpush2.msra.mxu0 0.0
    %195 = vmatprep.mubr.f32.mxu0 0.0
    %196 = vmatmul.mubr.f32.gmra.mxu0 %v107
    %v197 = vpop.f32.mrf.mxu0
    %v198 = vadd.f32 %v129, %v197
    %v199 = vpop.f32.mrf.mxu0
    %200 = vdwg.mxu0
    %vm201 = vcmask 130048
    %202 = vst.msk [vmem:[#allocation2] sm:$0xff] %vm201, %v198
    // Predicated region
    $region22: #{mlp_forward.1} parent=1 // pred_check
      _
    $region23: #{mlp_forward.1} parent=1 // pred_check_branch
      %204 = sbr.rel (0) target = $region25
    $region24: #{mlp_forward.1} parent=1 // pred_region
      %s206 = ssub.s32 128, 128
      %207 = vsyncadd [#allocation3], %s206
      %s209 = sshll.u32 [#allocation2], 4
      %s210 = int_to_ptr.vmem [resolvable:$true] %s209
      %212 = dma.vmem_to_hbm [thread:$0]  %s210, 128, %s5, [#allocation3]
    $region25: #{mlp_forward.1} parent=1 // pred_fallthru
      _
    // Predicated region
    $region26: #{mlp_forward.1} parent=1 // pred_check
      _
    $region27: #{mlp_forward.1} parent=1 // pred_check_branch
      %214 = sbr.rel (0) target = $region29
    $region28: #{mlp_forward.1} parent=1 // pred_region
      %215 = dma.done [#allocation3], 128
    $region29: #{mlp_forward.1} parent=1 // pred_fallthru
      _
    %216 = vsyncpa [#allocation3], 1

</llo_original>
